<compile_context>
chip_gen: v7x
topology: tpu7x:2x2x1
jax: 0.10.0
libtpu: 0.0.40
codegen_flags: <defaults>
</compile_context>

<pallas_src>
import functools

import jax
import jax.numpy as jnp
from jax.experimental import pallas as pl
from jax.experimental.pallas import tpu as pltpu


def classifier_kernel(x_ref, w1_ref, b1_ref, w2_ref, b2_ref, ent_ref):
    # x_ref:  (tile_m, D) bf16   w1_ref: (D, D) bf16   b1_ref: (1, D) f32
    # w2_ref: (D, E) bf16        b2_ref: (1, E) f32    ent_ref: (tile_m, E) f32
    x = x_ref[...]

    # linear1 (MXU bf16 x bf16 -> f32 accumulate)
    h = jnp.dot(x, w1_ref[...], preferred_element_type=jnp.float32) + b1_ref[...]

    # dropout(p=0.2) -> identity in eval mode

    # mish gate h * tanh(softplus(h)) with a single exp:
    #   tanh(log(1 + e^h)) = (t^2 + 2t) / (t^2 + 2t + 2),  t = e^h
    h_c = jnp.minimum(h, 20.0)            # overflow guard for exp
    t = jnp.exp(h_c)
    u = t * (t + 2.0)
    gate = u / (u + 2.0)
    h = jnp.where(h > 20.0, h, h * gate)  # gate -> 1 for large h

    # linear2 (bf16 operands, f32 accumulate; E=5 lanes handled by MXU internal padding)
    y = jnp.dot(h.astype(w2_ref.dtype), w2_ref[...],
                preferred_element_type=jnp.float32) + b2_ref[...]

    # LogSoftmax over the class dim (5 lanes).
    m = jnp.max(y, axis=-1, keepdims=True)
    lse = jnp.log(jnp.sum(jnp.exp(y - m), axis=-1, keepdims=True)) + m
    ent_ref[...] = (y - lse).astype(ent_ref.dtype)


def _round_up(x, m):
    return (x + m - 1) // m * m


def _cdiv(a, b):
    return (a + b - 1) // b


@functools.partial(jax.jit, static_argnames=("tile_m",))
def entity_classifier_pallas(emb, w1, b1, w2, b2, *, tile_m=1024):
    """emb: (B, S, D) f32, w1: (D, D), b1: (D,), w2: (D, E), b2: (E,) -> (B, S, E) log-probs."""
    B, S, D = emb.shape
    E = w2.shape[1]
    M = B * S

    # Keep >= 2 grid steps whenever the row count allows it (both v7x TCs busy),
    # never exceed the (sublane-rounded) row count, and stay sublane-aligned.
    tile_m = max(8, min(tile_m, _round_up(_cdiv(M, 2), 8), _round_up(M, 8)))
    grid = (_cdiv(M, tile_m),)

    # Single fused reshape+cast pass; no padded copies of x or the weights.
    x = emb.reshape(M, D).astype(jnp.bfloat16)
    w1_b = w1.astype(jnp.bfloat16)
    w2_b = w2.astype(jnp.bfloat16)
    b1_r = b1.reshape(1, D).astype(jnp.float32)
    b2_r = b2.reshape(1, E).astype(jnp.float32)

    cost = pl.CostEstimate(
        flops=2 * M * D * (D + E),
        transcendentals=M * (D + E),          # mish exp + softmax exp
        bytes_accessed=(2 * M * D             # x bf16 read
                        + 4 * M * E           # compact f32 output write
                        + 2 * (D * D + D * E) # bf16 weights
                        + 4 * (D + E)),       # f32 biases
    )

    out = pl.pallas_call(
        classifier_kernel,
        out_shape=jax.ShapeDtypeStruct((M, E), jnp.float32),
        grid=grid,
        in_specs=[
            pl.BlockSpec((tile_m, D), lambda i: (i, 0)),   # x tile marches over rows
            pl.BlockSpec((D, D), lambda i: (0, 0)),        # W1 VMEM-resident (full-dim block)
            pl.BlockSpec((1, D), lambda i: (0, 0)),        # b1 VMEM-resident
            pl.BlockSpec((D, E), lambda i: (0, 0)),        # W2 VMEM-resident
            pl.BlockSpec((1, E), lambda i: (0, 0)),        # b2 VMEM-resident
        ],
        out_specs=pl.BlockSpec((tile_m, E), lambda i: (i, 0)),  # compact (M, 5) output
        compiler_params=pltpu.CompilerParams(
            dimension_semantics=("parallel",),             # shard rows across TCs (v7x)
        ),
        cost_estimate=cost,
    )(x, w1_b, b1_r, w2_b, b2_r)

    return out.reshape(B, S, E)


def _linear_init(key, fan_in, fan_out):
    """Deterministic init mirroring nn.Linear default U(-1/sqrt(fan_in), 1/sqrt(fan_in)).

    Weight returned as (fan_in, fan_out) so the kernel does x @ W (== x @ W_pt^T)."""
    kw, kb = jax.random.split(key)
    bound = 1.0 / jnp.sqrt(jnp.float32(fan_in))
    w = jax.random.uniform(kw, (fan_in, fan_out), jnp.float32, -bound, bound)
    b = jax.random.uniform(kb, (fan_out,), jnp.float32, -bound, bound)
    return w, b


def reference_jnp(emb, w1, b1, w2, b2):
    h = emb @ w1 + b1
    h = h * jnp.tanh(jax.nn.softplus(h))
    y = h @ w2 + b2
    return jax.nn.log_softmax(y, axis=2)


if __name__ == "__main__":
    CNN_DIM = 100     # Classifier input_dim (IDCNN output feature dim)
    EDIM = 5          # Classifier output_dim (number of entity tags)

    root = jax.random.PRNGKey(0)
    k_emb, k_l1, k_l2, k_emb2, k_emb3 = jax.random.split(root, 5)

    # Classifier parameters (deterministic).
    w1, b1 = _linear_init(k_l1, CNN_DIM, CNN_DIM)   # linear1: 100 -> 100
    w2, b2 = _linear_init(k_l2, CNN_DIM, EDIM)      # linear2: 100 -> edim

    # bf16 MXU operands -> compare against the f32 reference at a loosened tolerance.
    TOL = 3e-2

    # --- small test (module-sized): B=2, S=8 -> M=16, tile_m=8, grid=(2,) ---
    B, S = 2, 8
    embeddings = jax.random.normal(k_emb, (B, S, CNN_DIM), jnp.float32)
    entity = jax.block_until_ready(entity_classifier_pallas(embeddings, w1, b1, w2, b2))
    ref = reference_jnp(embeddings, w1, b1, w2, b2)
    assert entity.shape == (B, S, EDIM)
    assert jnp.allclose(entity, ref, atol=TOL, rtol=TOL)

    # --- ragged test: M=21 not a multiple of tile_m -> exercises masked edge block ---
    B3, S3 = 3, 7
    embeddings3 = jax.random.normal(k_emb3, (B3, S3, CNN_DIM), jnp.float32)
    entity3 = jax.block_until_ready(entity_classifier_pallas(embeddings3, w1, b1, w2, b2))
    ref3 = reference_jnp(embeddings3, w1, b1, w2, b2)
    assert entity3.shape == (B3, S3, EDIM)
    assert jnp.allclose(entity3, ref3, atol=TOL, rtol=TOL)

    # --- larger test: M=1024 -> tile_m=512, two pipelined/parallel grid steps ---
    B2, S2 = 4, 256
    embeddings2 = jax.random.normal(k_emb2, (B2, S2, CNN_DIM), jnp.float32)
    entity2 = jax.block_until_ready(entity_classifier_pallas(embeddings2, w1, b1, w2, b2))
    ref2 = reference_jnp(embeddings2, w1, b1, w2, b2)
    assert entity2.shape == (B2, S2, EDIM)
    assert jnp.allclose(entity2, ref2, atol=TOL, rtol=TOL)

    print("KERNEL_OK")
</pallas_src>

<mosaic_0001>
module attributes {stable_mosaic.version = 11 : i64} {
  func.func @classifier_kernel(%arg0: i32, %arg1: memref<8x100xbf16, #tpu.memory_space<vmem>>, %arg2: memref<100x100xbf16, #tpu.memory_space<vmem>>, %arg3: memref<1x100xf32, #tpu.memory_space<vmem>>, %arg4: memref<100x5xbf16, #tpu.memory_space<vmem>>, %arg5: memref<1x5xf32, #tpu.memory_space<vmem>>, %arg6: memref<8x5xf32, #tpu.memory_space<vmem>>) attributes {dimension_semantics = [#tpu.dimension_semantics<parallel>], iteration_bounds = array<i64: 2>, scalar_prefetch = 0 : i64, scratch_operands = 0 : i64, tpu.core_type = #tpu.core_type<tc>, window_params = [{transform_indices = @transform_0, window_bounds = array<i64: 8, 100>}, {pipeline_mode = #tpu.pipeline_mode<synchronous>, transform_indices = @transform_1, window_bounds = array<i64: 100, 100>}, {pipeline_mode = #tpu.pipeline_mode<synchronous>, transform_indices = @transform_2, window_bounds = array<i64: 1, 100>}, {pipeline_mode = #tpu.pipeline_mode<synchronous>, transform_indices = @transform_3, window_bounds = array<i64: 100, 5>}, {pipeline_mode = #tpu.pipeline_mode<synchronous>, transform_indices = @transform_4, window_bounds = array<i64: 1, 5>}, {transform_indices = @transform_5, window_bounds = array<i64: 8, 5>}]} {
    %c0 = arith.constant 0 : index
    %c0_0 = arith.constant 0 : index
    %0 = vector.load %arg1[%c0, %c0_0] : memref<8x100xbf16, #tpu.memory_space<vmem>>, vector<8x100xbf16>
    %c0_1 = arith.constant 0 : index
    %c0_2 = arith.constant 0 : index
    %1 = vector.load %arg2[%c0_1, %c0_2] : memref<100x100xbf16, #tpu.memory_space<vmem>>, vector<100x100xbf16>
    %cst = arith.constant dense<0.000000e+00> : vector<8x100xf32>
    %2 = tpu.matmul %0, %1, %cst {dimension_numbers = #tpu.dot_dimension_numbers<[1], [0], [0], [1], [0, 0, 1, 1], [], []>} : vector<8x100xbf16>, vector<100x100xbf16>, vector<8x100xf32> -> vector<8x100xf32>
    %c0_3 = arith.constant 0 : index
    %c0_4 = arith.constant 0 : index
    %3 = vector.load %arg3[%c0_3, %c0_4] : memref<1x100xf32, #tpu.memory_space<vmem>>, vector<1x100xf32>
    %4 = vector.broadcast %3 : vector<1x100xf32> to vector<8x100xf32>
    %5 = arith.addf %2, %4 : vector<8x100xf32>
    %cst_5 = arith.constant 2.000000e+01 : f32
    %6 = vector.broadcast %cst_5 : f32 to vector<8x100xf32>
    %7 = arith.minimumf %5, %6 : vector<8x100xf32>
    %8 = math.exp %7 : vector<8x100xf32>
    %cst_6 = arith.constant 2.000000e+00 : f32
    %9 = vector.broadcast %cst_6 : f32 to vector<8x100xf32>
    %10 = arith.addf %8, %9 : vector<8x100xf32>
    %11 = arith.mulf %8, %10 : vector<8x100xf32>
    %cst_7 = arith.constant 2.000000e+00 : f32
    %12 = vector.broadcast %cst_7 : f32 to vector<8x100xf32>
    %13 = arith.addf %11, %12 : vector<8x100xf32>
    %14 = arith.divf %11, %13 : vector<8x100xf32>
    %cst_8 = arith.constant 2.000000e+01 : f32
    %15 = vector.broadcast %cst_8 : f32 to vector<8x100xf32>
    %16 = arith.cmpf ogt, %5, %15 : vector<8x100xf32>
    %17 = arith.mulf %5, %14 : vector<8x100xf32>
    %18 = arith.select %16, %5, %17 : vector<8x100xi1>, vector<8x100xf32>
    %19 = arith.truncf %18 : vector<8x100xf32> to vector<8x100xbf16>
    %c0_9 = arith.constant 0 : index
    %c0_10 = arith.constant 0 : index
    %20 = vector.load %arg4[%c0_9, %c0_10] : memref<100x5xbf16, #tpu.memory_space<vmem>>, vector<100x5xbf16>
    %cst_11 = arith.constant dense<0.000000e+00> : vector<8x5xf32>
    %21 = tpu.matmul %19, %20, %cst_11 {dimension_numbers = #tpu.dot_dimension_numbers<[1], [0], [0], [1], [0, 0, 1, 1], [], []>} : vector<8x100xbf16>, vector<100x5xbf16>, vector<8x5xf32> -> vector<8x5xf32>
    %c0_12 = arith.constant 0 : index
    %c0_13 = arith.constant 0 : index
    %22 = vector.load %arg5[%c0_12, %c0_13] : memref<1x5xf32, #tpu.memory_space<vmem>>, vector<1x5xf32>
    %23 = vector.broadcast %22 : vector<1x5xf32> to vector<8x5xf32>
    %24 = arith.addf %21, %23 : vector<8x5xf32>
    %cst_14 = arith.constant dense<0xFF800000> : vector<8xf32>
    %25 = vector.multi_reduction <maximumf>, %24, %cst_14 [1] : vector<8x5xf32> to vector<8xf32>
    %26 = vector.shape_cast %25 : vector<8xf32> to vector<8x1xf32>
    %27 = vector.broadcast %26 : vector<8x1xf32> to vector<8x5xf32>
    %28 = arith.subf %24, %27 : vector<8x5xf32>
    %29 = math.exp %28 : vector<8x5xf32>
    %cst_15 = arith.constant dense<0.000000e+00> : vector<8xf32>
    %30 = vector.multi_reduction <add>, %29, %cst_15 [1] : vector<8x5xf32> to vector<8xf32>
    %31 = vector.shape_cast %30 : vector<8xf32> to vector<8x1xf32>
    %32 = math.log %31 : vector<8x1xf32>
    %33 = arith.addf %32, %26 : vector<8x1xf32>
    %34 = vector.broadcast %33 : vector<8x1xf32> to vector<8x5xf32>
    %35 = arith.subf %24, %34 : vector<8x5xf32>
    %c0_16 = arith.constant 0 : index
    %c0_17 = arith.constant 0 : index
    %36 = vector.load %arg6[%c0_16, %c0_17] : memref<8x5xf32, #tpu.memory_space<vmem>>, vector<8x5xf32>
    tpu.vector_store %arg6[%c0_16, %c0_17], %35 {strides = array<i32>} : memref<8x5xf32, #tpu.memory_space<vmem>>, vector<8x5xf32>,
    return
  }
  func.func @transform_0(%arg0: i32) -> (i32, i32) {
    %c0_i32 = arith.constant 0 : i32
    %c0_i32_0 = arith.constant 0 : i32
    return %arg0, %c0_i32 : i32, i32
  }
  func.func @transform_1(%arg0: i32) -> (i32, i32) {
    %c0_i32 = arith.constant 0 : i32
    %c0_i32_0 = arith.constant 0 : i32
    %c0_i32_1 = arith.constant 0 : i32
    return %c0_i32, %c0_i32_0 : i32, i32
  }
  func.func @transform_2(%arg0: i32) -> (i32, i32) {
    %c0_i32 = arith.constant 0 : i32
    %c0_i32_0 = arith.constant 0 : i32
    %c0_i32_1 = arith.constant 0 : i32
    return %c0_i32, %c0_i32_0 : i32, i32
  }
  func.func @transform_3(%arg0: i32) -> (i32, i32) {
    %c0_i32 = arith.constant 0 : i32
    %c0_i32_0 = arith.constant 0 : i32
    %c0_i32_1 = arith.constant 0 : i32
    return %c0_i32, %c0_i32_0 : i32, i32
  }
  func.func @transform_4(%arg0: i32) -> (i32, i32) {
    %c0_i32 = arith.constant 0 : i32
    %c0_i32_0 = arith.constant 0 : i32
    %c0_i32_1 = arith.constant 0 : i32
    return %c0_i32, %c0_i32_0 : i32, i32
  }
  func.func @transform_5(%arg0: i32) -> (i32, i32) {
    %c0_i32 = arith.constant 0 : i32
    %c0_i32_0 = arith.constant 0 : i32
    return %arg0, %c0_i32 : i32, i32
  }
}

</mosaic_0001>

<llo_original>
// kernel: entity_classifier_pallas.1
$region0: #{entity_classifier_pallas.1}
  #allocation0 [shape = 'u32[]', space=smem, size = 0x4, offset = 0x4, fixed_abs, tag = 'smem constant byte address 0x4 - core index']
  #allocation1 [shape = 'u32[144,128]{1,0:T(1,128)}', space=vmem, size = 0x12000, scoped, tag = 'internal scratch']
  %s0 = inlined_call_operand.vmem [shape: bf16[16,100], index: 0, kind: input, shape index: {}]
  %s1 = inlined_call_operand.vmem [shape: bf16[100,100], index: 1, kind: input, shape index: {}]
  %s2 = inlined_call_operand.vmem [shape: f32[1,100], index: 2, kind: input, shape index: {}]
  %s3 = inlined_call_operand.vmem [shape: bf16[100,5], index: 3, kind: input, shape index: {}]
  %s4 = inlined_call_operand.vmem [shape: f32[1,5], index: 4, kind: input, shape index: {}]
  %s5 = inlined_call_operand.vmem [shape: f32[16,5], index: 5, kind: output, shape index: {}]
  %s6 = sld [smem:[#allocation0]]
  $region53: #{entity_classifier_pallas.1} parent=0
    _
  %s8 = ssub.s32 1, %s6
  %s9 = scalar_select 0, %s8, %s6
  loop: start=0, step=1, limit=4
  $region2: #{entity_classifier_pallas.1} parent=0 // loop_pre_header
    _
  $region3: #{entity_classifier_pallas.1} parent=0 // loop_header
    %s11 = sphi 0, %s15
    %p12 = scmp.ge.s32.totalorder %s11, 4
    %s21 = sphi 0, %s23
    %s24 = sphi 0, %s21
    %s25 = sphi 0, %s24
    %s41 = sphi 0, %s25
    %s45 = sphi 0, %s45
    %s47 = sphi 0, %s45
    %s48 = sphi 0, %s47
    %s62 = sphi 0, %s48
    %s66 = sphi 0, %s66
    %s68 = sphi 0, %s66
    %s69 = sphi 0, %s68
    %s83 = sphi 0, %s69
    %s87 = sphi 0, %s87
    %s89 = sphi 0, %s87
    %s90 = sphi 0, %s89
    %s104 = sphi 0, %s90
    %s108 = sphi 0, %s108
    %s110 = sphi 0, %s108
    %s111 = sphi 0, %s110
    %s125 = sphi 0, %s111
    %s131 = sphi 0, %s133
    %s134 = sphi 0, %s131
    %s135 = sphi 0, %s134
    %s151 = sphi 0, %s135
  $region4: #{entity_classifier_pallas.1} parent=0 // loop_header_branch
    %14 = sbr.rel (%p12) target = $region8
  $region5: #{entity_classifier_pallas.1} parent=0 // loop_body
    %s16 = ssub.s32 %s11, 1
    %s17 = ssub.s32 %s11, 2
    %s18 = sadd.s32 %s11, 1
    %s19 = ssub.s32 %s11, %s18
    %p20 = scmp.eq.s32.totalorder %s19, 0
    %s22 = sadd.s32 %s21, 1
    %s23 = scalar_select %p20, %s21, %s22
    %p26 = pneg %p20
    %p27 = scmp.eq.s32.totalorder %s11, 1
    %p28 = por %p26, %p27
    %p29 = scmp.ne.s32.totalorder %s21, %s24
    %p30 = scmp.eq.s32.totalorder %s11, 0
    %p31 = por %p29, %p30
    %p32 = scmp.ne.s32.totalorder %s21, %s24
    %p33 = scmp.eq.s32.totalorder %s16, 1
    %p34 = por %p32, %p33
    %p35 = scmp.ne.s32.totalorder %s24, %s25
    %p36 = scmp.eq.s32.totalorder %s16, 0
    %p37 = por %p35, %p36
    %p38 = scmp.ne.s32.totalorder %s24, %s25
    %p39 = scmp.eq.s32.totalorder %s17, 1
    %p40 = por %p38, %p39
    %p42 = scmp.ne.s32.totalorder %s25, %s41
    %p43 = scmp.eq.s32.totalorder %s17, 0
    %p44 = por %p42, %p43
    %s46 = sadd.s32 %s45, 1
    %p49 = scmp.eq.s32.totalorder %s11, 1
    %p50 = scmp.ne.s32.totalorder %s45, %s47
    %p51 = scmp.eq.s32.totalorder %s11, 0
    %p52 = por %p50, %p51
    %p53 = scmp.ne.s32.totalorder %s45, %s47
    %p54 = scmp.eq.s32.totalorder %s16, 1
    %p55 = por %p53, %p54
    %p56 = scmp.ne.s32.totalorder %s47, %s48
    %p57 = scmp.eq.s32.totalorder %s16, 0
    %p58 = por %p56, %p57
    %p59 = scmp.ne.s32.totalorder %s47, %s48
    %p60 = scmp.eq.s32.totalorder %s17, 1
    %p61 = por %p59, %p60
    %p63 = scmp.ne.s32.totalorder %s48, %s62
    %p64 = scmp.eq.s32.totalorder %s17, 0
    %p65 = por %p63, %p64
    %s67 = sadd.s32 %s66, 1
    %p70 = scmp.eq.s32.totalorder %s11, 1
    %p71 = scmp.ne.s32.totalorder %s66, %s68
    %p72 = scmp.eq.s32.totalorder %s11, 0
    %p73 = por %p71, %p72
    %p74 = scmp.ne.s32.totalorder %s66, %s68
    %p75 = scmp.eq.s32.totalorder %s16, 1
    %p76 = por %p74, %p75
    %p77 = scmp.ne.s32.totalorder %s68, %s69
    %p78 = scmp.eq.s32.totalorder %s16, 0
    %p79 = por %p77, %p78
    %p80 = scmp.ne.s32.totalorder %s68, %s69
    %p81 = scmp.eq.s32.totalorder %s17, 1
    %p82 = por %p80, %p81
    %p84 = scmp.ne.s32.totalorder %s69, %s83
    %p85 = scmp.eq.s32.totalorder %s17, 0
    %p86 = por %p84, %p85
    %s88 = sadd.s32 %s87, 1
    %p91 = scmp.eq.s32.totalorder %s11, 1
    %p92 = scmp.ne.s32.totalorder %s87, %s89
    %p93 = scmp.eq.s32.totalorder %s11, 0
    %p94 = por %p92, %p93
    %p95 = scmp.ne.s32.totalorder %s87, %s89
    %p96 = scmp.eq.s32.totalorder %s16, 1
    %p97 = por %p95, %p96
    %p98 = scmp.ne.s32.totalorder %s89, %s90
    %p99 = scmp.eq.s32.totalorder %s16, 0
    %p100 = por %p98, %p99
    %p101 = scmp.ne.s32.totalorder %s89, %s90
    %p102 = scmp.eq.s32.totalorder %s17, 1
    %p103 = por %p101, %p102
    %p105 = scmp.ne.s32.totalorder %s90, %s104
    %p106 = scmp.eq.s32.totalorder %s17, 0
    %p107 = por %p105, %p106
    %s109 = sadd.s32 %s108, 1
    %p112 = scmp.eq.s32.totalorder %s11, 1
    %p113 = scmp.ne.s32.totalorder %s108, %s110
    %p114 = scmp.eq.s32.totalorder %s11, 0
    %p115 = por %p113, %p114
    %p116 = scmp.ne.s32.totalorder %s108, %s110
    %p117 = scmp.eq.s32.totalorder %s16, 1
    %p118 = por %p116, %p117
    %p119 = scmp.ne.s32.totalorder %s110, %s111
    %p120 = scmp.eq.s32.totalorder %s16, 0
    %p121 = por %p119, %p120
    %p122 = scmp.ne.s32.totalorder %s110, %s111
    %p123 = scmp.eq.s32.totalorder %s17, 1
    %p124 = por %p122, %p123
    %p126 = scmp.ne.s32.totalorder %s111, %s125
    %p127 = scmp.eq.s32.totalorder %s17, 0
    %p128 = por %p126, %p127
    %s129 = ssub.s32 %s11, %s18
    %p130 = scmp.eq.s32.totalorder %s129, 0
    %s132 = sadd.s32 %s131, 1
    %s133 = scalar_select %p130, %s131, %s132
    %p136 = pneg %p130
    %p137 = scmp.eq.s32.totalorder %s11, 1
    %p138 = por %p136, %p137
    %p139 = scmp.ne.s32.totalorder %s131, %s134
    %p140 = scmp.eq.s32.totalorder %s11, 0
    %p141 = por %p139, %p140
    %p142 = scmp.ne.s32.totalorder %s131, %s134
    %p143 = scmp.eq.s32.totalorder %s16, 1
    %p144 = por %p142, %p143
    %p145 = scmp.ne.s32.totalorder %s134, %s135
    %p146 = scmp.eq.s32.totalorder %s16, 0
    %p147 = por %p145, %p146
    %p148 = scmp.ne.s32.totalorder %s134, %s135
    %p149 = scmp.eq.s32.totalorder %s17, 1
    %p150 = por %p148, %p149
    %p152 = scmp.ne.s32.totalorder %s135, %s151
    %p153 = scmp.eq.s32.totalorder %s17, 0
    %p154 = por %p152, %p153
    %p155 = scmp.le.s32.totalorder 1, %s11
    %p156 = scmp.lt.s32.totalorder %s11, 3
    %p157 = pnand %p155, %p156
    %p158 = pneg %p157
    // Predicated region
    $region9: #{entity_classifier_pallas.1} parent=5 // pred_check
      _
    $region10: #{entity_classifier_pallas.1} parent=5 // pred_check_branch
      %160 = sbr.rel (%p157) target = $region12
    $region11: #{entity_classifier_pallas.1} parent=5 // pred_region
      %s161 = ssub.s32 %s11, 1
      // Predicated region
      $region13: #{entity_classifier_pallas.1} parent=11 // pred_check
        %p162 = pneg %p58
      $region14: #{entity_classifier_pallas.1} parent=11 // pred_check_branch
        %164 = sbr.rel (%p162) target = $region16
      $region15: #{entity_classifier_pallas.1} parent=11 // pred_region
        _
      $region16: #{entity_classifier_pallas.1} parent=11 // pred_fallthru
        _
      // Predicated region
      $region17: #{entity_classifier_pallas.1} parent=11 // pred_check
        %p165 = pneg %p79
      $region18: #{entity_classifier_pallas.1} parent=11 // pred_check_branch
        %167 = sbr.rel (%p165) target = $region20
      $region19: #{entity_classifier_pallas.1} parent=11 // pred_region
        _
      $region20: #{entity_classifier_pallas.1} parent=11 // pred_fallthru
        _
      // Predicated region
      $region21: #{entity_classifier_pallas.1} parent=11 // pred_check
        %p168 = pneg %p100
      $region22: #{entity_classifier_pallas.1} parent=11 // pred_check_branch
        %170 = sbr.rel (%p168) target = $region24
      $region23: #{entity_classifier_pallas.1} parent=11 // pred_region
        _
      $region24: #{entity_classifier_pallas.1} parent=11 // pred_fallthru
        _
      // Predicated region
      $region25: #{entity_classifier_pallas.1} parent=11 // pred_check
        %p171 = pneg %p121
      $region26: #{entity_classifier_pallas.1} parent=11 // pred_check_branch
        %173 = sbr.rel (%p171) target = $region28
      $region27: #{entity_classifier_pallas.1} parent=11 // pred_region
        _
      $region28: #{entity_classifier_pallas.1} parent=11 // pred_fallthru
        _
    $region12: #{entity_classifier_pallas.1} parent=5 // pred_fallthru
      _
    %p174 = scmp.lt.s32.totalorder %s11, 2
    // Predicated region
    $region29: #{entity_classifier_pallas.1} parent=5 // pred_check
      %p175 = pneg %p174
    $region30: #{entity_classifier_pallas.1} parent=5 // pred_check_branch
      %177 = sbr.rel (%p175) target = $region32
    $region31: #{entity_classifier_pallas.1} parent=5 // pred_region
      // Predicated region
      $region33: #{entity_classifier_pallas.1} parent=31 // pred_check
        %p178 = pneg %p31
      $region34: #{entity_classifier_pallas.1} parent=31 // pred_check_branch
        %180 = sbr.rel (%p178) target = $region36
      $region35: #{entity_classifier_pallas.1} parent=31 // pred_region
        %p181 = scmp.lt.s32.totalorder %s11, 1
        %s182 = scalar_select %p181, %s11, 1
        %s183 = smul.addr %s182, 4
        %s184 = scalar_lea.vmem %s0, %s183
      $region36: #{entity_classifier_pallas.1} parent=31 // pred_fallthru
        _
    $region32: #{entity_classifier_pallas.1} parent=5 // pred_fallthru
      _
    %p185 = scmp.le.s32.totalorder 1, %s11
    %p186 = scmp.lt.s32.totalorder %s11, 3
    %p187 = pnand %p185, %p186
    %p188 = pneg %p187
    // Predicated region
    $region37: #{entity_classifier_pallas.1} parent=5 // pred_check
      _
    $region38: #{entity_classifier_pallas.1} parent=5 // pred_check_branch
      %190 = sbr.rel (%p187) target = $region40
    $region39: #{entity_classifier_pallas.1} parent=5 // pred_region
      %s191 = ssub.s32 %s11, 1
      %p192 = scmp.lt.s32.totalorder %s16, 1
      %s193 = scalar_select %p192, %s16, 1
      %s194 = smul.addr %s193, 4
      %s195 = scalar_lea.vmem %s0, %s194
      %p196 = pneg %p37
      %p197 = pneg %p34
      %p198 = pneg %p58
      %p199 = pneg %p55
      %p200 = pneg %p79
      %p201 = pneg %p76
      %p202 = pneg %p100
      %p203 = pneg %p97
      %p204 = pneg %p121
      %p205 = pneg %p118
      %p206 = pneg %p147
      %p207 = pneg %p144
      %p208 = scmp.lt.s32.totalorder %s16, 1
      %s209 = scalar_select %p208, %s16, 1
      %s210 = smul.addr %s209, 8
      %s211 = scalar_lea.vmem %s5, %s210
      %p212 = scmp.lt.s32.totalorder %s16, 1
      %s213 = scalar_select %p212, %s16, 1
      %s214 = smul.addr %s213, 4
      %s215 = scalar_lea.vmem %s0, %s214
      %p216 = scmp.lt.s32.totalorder %s16, 1
      %s217 = scalar_select %p216, %s16, 1
      %s218 = smul.addr %s217, 8
      %s219 = scalar_lea.vmem %s5, %s218
      %v221 = vld [vmem:[%s215] sm:$0xf]
      %v222 = vld [vmem:[%s1] sm:$0xf]
      %v223 = vld [vmem:[%s1 + $0x4] sm:$0xf]
      %v224 = vld [vmem:[%s1 + $0x8] sm:$0xf]
      %v225 = vld [vmem:[%s1 + $0xc] sm:$0xf]
      %v226 = vld [vmem:[%s1 + $0x10] sm:$0xf]
      %v227 = vld [vmem:[%s1 + $0x14] sm:$0xf]
      %v228 = vld [vmem:[%s1 + $0x18] sm:$0xf]
      %v229 = vld [vmem:[%s1 + $0x1c] sm:$0xf]
      %v230 = vld [vmem:[%s1 + $0x20] sm:$0xf]
      %v231 = vld [vmem:[%s1 + $0x24] sm:$0xf]
      %v232 = vld [vmem:[%s1 + $0x28] sm:$0xf]
      %v233 = vld [vmem:[%s1 + $0x2c] sm:$0xf]
      %v234 = vld [vmem:[%s1 + $0x30] sm:$0x3]
      %v235 = vld [vmem:[%s2] sm:$0x1]
      %v237 = vlaneseq
      %v238 = vshrl.u32 %v237, 7
      %v239 = vsub.s32 0, %v238
      %v240 = vrot.slane %v235, %v239
      %v255 = vunpack.c.l.b16 %v222
      %v256 = vunpack.c.l.b16 %v223
      %v257 = vunpack.c.l.b16 %v224
      %v258 = vunpack.c.l.b16 %v225
      %v259 = vunpack.c.l.b16 %v226
      %v260 = vunpack.c.l.b16 %v227
      %v261 = vunpack.c.l.b16 %v228
      %v262 = vunpack.c.l.b16 %v229
      %v263 = vunpack.c.l.b16 %v230
      %v264 = vunpack.c.l.b16 %v231
      %v265 = vunpack.c.l.b16 %v232
      %v266 = vunpack.c.l.b16 %v233
      %v267 = vunpack.c.l.b16 %v234
      %v268 = vpack.c.b16 %v256, %v255
      %v269 = vpack.c.b16 %v258, %v257
      %v270 = vpack.c.b16 %v260, %v259
      %v271 = vpack.c.b16 %v262, %v261
      %v272 = vpack.c.b16 %v264, %v263
      %v273 = vpack.c.b16 %v266, %v265
      %v274 = vpack.c.b16 %v267, %v267
      %vm281 = vcmask 818176
      %v283 = vsel %vm281, %v221, 0
      %vm285 = vcmask 1041408
      %v287 = vsel %vm285, %v274, 0
      %289 = vmatprep.subr.bf16.mxu0 0
      %290 = vmatpush1.bf16.msra.mxu0 %v268
      %291 = vmatprep.subr.bf16.mxu0 0
      %292 = vmatpush1.bf16.msra.mxu0 %v269
      %293 = vmatprep.subr.bf16.mxu0 0
      %294 = vmatpush1.bf16.msra.mxu0 %v270
      %295 = vmatprep.subr.bf16.mxu0 0
      %296 = vmatpush1.bf16.msra.mxu0 %v271
      %297 = vmatprep.subr.bf16.mxu0 0
      %298 = vmatpush1.bf16.msra.mxu0 %v272
      %299 = vmatprep.subr.bf16.mxu0 0
      %300 = vmatpush1.bf16.msra.mxu0 %v273
      %301 = vmatprep.subr.bf16.mxu0 0
      %302 = vmatpush1.bf16.msra.mxu0 %v287
      %303 = vmatprep.subr.bf16.mxu0 0
      %304 = vmatpush1.bf16.msra.mxu0 0
      %305 = vmatprep.subr.bf16.mxu0 0
      %306 = vmatpush1.bf16.msra.mxu0 0
      %307 = vmatprep.subr.bf16.mxu0 0
      %308 = vmatpush1.bf16.msra.mxu0 0
      %309 = vmatprep.subr.bf16.mxu0 0
      %310 = vmatpush1.bf16.msra.mxu0 0
      %311 = vmatprep.subr.bf16.mxu0 0
      %312 = vmatpush1.bf16.msra.mxu0 0
      %313 = vmatprep.subr.bf16.mxu0 0
      %314 = vmatpush1.bf16.msra.mxu0 0
      %315 = vmatprep.subr.bf16.mxu0 0
      %316 = vmatpush1.bf16.msra.mxu0 0
      %317 = vmatprep.subr.bf16.mxu0 0
      %318 = vmatpush1.bf16.msra.mxu0 0
      %319 = vmatprep.subr.bf16.mxu0 0
      %320 = vmatpush1.bf16.msra.mxu0 0
      %321 = vmatprep.mubr.bf16.mxu0 0
      %322 = vmatmul.mubr.bf16.gmra.mrb[0].mxu0 %v283
      %v323 = vpop.f32.mrb[0].mxu0
      %v324 = vadd.f32 %v240, %v323
      %v325 = vpop.f32.mrb[0].mxu0
      %v326 = vpop.f32.mrb[0].mxu0
      %v327 = vpop.f32.mrb[0].mxu0
      %328 = vdwg.mxu0
      %v329 = vmin.f32 %v324, 20.0
      %v330 = vmul.f32 %v329, 1.442695
      %v331 = vpow.pop %v330
      %v332 = vadd.f32 %v331, 2.0
      %v333 = vmul.f32 %v331, %v332
      %v334 = vadd.f32 %v333, 2.0
      %v335 = vrcp.pop %v334
      %v336 = vmul.f32 %v333, %v335
      %vm337 = vcmp.gt.f32.partialorder %v324, 20.0
      %v338 = vmul.f32 %v324, %v336
      %v339 = vsel %vm337, %v324, %v338
      %v340 = vpack.c.bf16 %v339, %v339
      %v341 = vld [vmem:[%s3] sm:$0xf]
      %v342 = vld [vmem:[%s3 + $0x4] sm:$0xf]
      %v343 = vld [vmem:[%s3 + $0x8] sm:$0xf]
      %v344 = vld [vmem:[%s3 + $0xc] sm:$0xf]
      %v345 = vld [vmem:[%s3 + $0x10] sm:$0xf]
      %v346 = vld [vmem:[%s3 + $0x14] sm:$0xf]
      %v347 = vld [vmem:[%s3 + $0x18] sm:$0xf]
      %v348 = vld [vmem:[%s3 + $0x1c] sm:$0xf]
      %v349 = vld [vmem:[%s3 + $0x20] sm:$0xf]
      %v350 = vld [vmem:[%s3 + $0x24] sm:$0xf]
      %v351 = vld [vmem:[%s3 + $0x28] sm:$0xf]
      %v352 = vld [vmem:[%s3 + $0x2c] sm:$0xf]
      %v353 = vld [vmem:[%s3 + $0x30] sm:$0x3]
      %v354 = vld [vmem:[%s4] sm:$0x1]
      %v356 = vlaneseq
      %v357 = vshrl.u32 %v356, 7
      %v358 = vsub.s32 0, %v357
      %v359 = vrot.slane %v354, %v358
      %v374 = vunpack.c.l.b16 %v341
      %v375 = vunpack.c.l.b16 %v342
      %v376 = vunpack.c.l.b16 %v343
      %v377 = vunpack.c.l.b16 %v344
      %v378 = vunpack.c.l.b16 %v345
      %v379 = vunpack.c.l.b16 %v346
      %v380 = vunpack.c.l.b16 %v347
      %v381 = vunpack.c.l.b16 %v348
      %v382 = vunpack.c.l.b16 %v349
      %v383 = vunpack.c.l.b16 %v350
      %v384 = vunpack.c.l.b16 %v351
      %v385 = vunpack.c.l.b16 %v352
      %v386 = vunpack.c.l.b16 %v353
      %v387 = vpack.c.b16 %v375, %v374
      %v388 = vpack.c.b16 %v377, %v376
      %v389 = vpack.c.b16 %v379, %v378
      %v390 = vpack.c.b16 %v381, %v380
      %v391 = vpack.c.b16 %v383, %v382
      %v392 = vpack.c.b16 %v385, %v384
      %v393 = vpack.c.b16 %v386, %v386
      %v401 = vsel %vm281, %v340, 0
      %v404 = vsel %vm285, %v393, 0
      %406 = vmatprep.subr.bf16.mxu0 0
      %407 = vmatpush1.bf16.msra.mxu0 %v387
      %408 = vmatprep.subr.bf16.mxu0 0
      %409 = vmatpush1.bf16.msra.mxu0 %v388
      %410 = vmatprep.subr.bf16.mxu0 0
      %411 = vmatpush1.bf16.msra.mxu0 %v389
      %412 = vmatprep.subr.bf16.mxu0 0
      %413 = vmatpush1.bf16.msra.mxu0 %v390
      %414 = vmatprep.subr.bf16.mxu0 0
      %415 = vmatpush1.bf16.msra.mxu0 %v391
      %416 = vmatprep.subr.bf16.mxu0 0
      %417 = vmatpush1.bf16.msra.mxu0 %v392
      %418 = vmatprep.subr.bf16.mxu0 0
      %419 = vmatpush1.bf16.msra.mxu0 %v404
      %420 = vmatprep.subr.bf16.mxu0 0
      %421 = vmatpush1.bf16.msra.mxu0 0
      %422 = vmatprep.subr.bf16.mxu0 0
      %423 = vmatpush1.bf16.msra.mxu0 0
      %424 = vmatprep.subr.bf16.mxu0 0
      %425 = vmatpush1.bf16.msra.mxu0 0
      %426 = vmatprep.subr.bf16.mxu0 0
      %427 = vmatpush1.bf16.msra.mxu0 0
      %428 = vmatprep.subr.bf16.mxu0 0
      %429 = vmatpush1.bf16.msra.mxu0 0
      %430 = vmatprep.subr.bf16.mxu0 0
      %431 = vmatpush1.bf16.msra.mxu0 0
      %432 = vmatprep.subr.bf16.mxu0 0
      %433 = vmatpush1.bf16.msra.mxu0 0
      %434 = vmatprep.subr.bf16.mxu0 0
      %435 = vmatpush1.bf16.msra.mxu0 0
      %436 = vmatprep.subr.bf16.mxu0 0
      %437 = vmatpush1.bf16.msra.mxu0 0
      %438 = vmatprep.mubr.bf16.mxu0 0
      %439 = vmatmul.mubr.bf16.gmra.mrb[0].mxu0 %v401
      %v440 = vpop.f32.mrb[0].mxu0
      %v441 = vadd.f32 %v359, %v440
      %v442 = vpop.f32.mrb[0].mxu0
      %v443 = vpop.f32.mrb[0].mxu0
      %v444 = vpop.f32.mrb[0].mxu0
      %445 = vdwg.mxu0
      %vm446 = vcmask 39936
      %v447 = vsel %vm446, %v441, -inf
      %448 = vmax.xlane.f32.xlu0 %v447
      %v449 = vpop.xlane.xlu0 %448
      %v450 = vsub.f32 %v441, %v449
      %v451 = vmul.f32 %v450, 1.442695
      %v452 = vpow.pop %v451
      %v453 = vsel %vm446, %v452, 0.0
      %454 = vadd.xlane.f32.xlu0 %v453
      %v455 = vpop.xlane.xlu0 %454
      %v456 = vlog2.pop %v455
      %v457 = vmul.f32 %v456, 0.6931472
      %v458 = vadd.f32 %v457, %v449
      %v459 = vsub.f32 %v441, %v458
      %460 = vst.msk [vmem:[%s219] sm:$0xff] %vm446, %v459
      %p461 = scmp.lt.s32.totalorder %s16, 1
      %s462 = scalar_select %p461, %s16, 1
      %s463 = smul.addr %s462, 8
      %s464 = scalar_lea.vmem %s5, %s463
      // Predicated region
      $region41: #{entity_classifier_pallas.1} parent=39 // pred_check
        %p465 = pneg %p144
      $region42: #{entity_classifier_pallas.1} parent=39 // pred_check_branch
        %467 = sbr.rel (%p465) target = $region44
      $region43: #{entity_classifier_pallas.1} parent=39 // pred_region
        _
      $region44: #{entity_classifier_pallas.1} parent=39 // pred_fallthru
        _
    $region40: #{entity_classifier_pallas.1} parent=5 // pred_fallthru
      _
    %p468 = scmp.le.s32.totalorder 2, %s11
    // Predicated region
    $region45: #{entity_classifier_pallas.1} parent=5 // pred_check
      %p469 = pneg %p468
    $region46: #{entity_classifier_pallas.1} parent=5 // pred_check_branch
      %471 = sbr.rel (%p469) target = $region48
    $region47: #{entity_classifier_pallas.1} parent=5 // pred_region
      %s472 = ssub.s32 %s11, 2
      // Predicated region
      $region49: #{entity_classifier_pallas.1} parent=47 // pred_check
        %p473 = pneg %p150
      $region50: #{entity_classifier_pallas.1} parent=47 // pred_check_branch
        %475 = sbr.rel (%p473) target = $region52
      $region51: #{entity_classifier_pallas.1} parent=47 // pred_region
        %p476 = scmp.lt.s32.totalorder %s17, 1
        %s477 = scalar_select %p476, %s17, 1
        %s478 = smul.addr %s477, 8
        %s479 = scalar_lea.vmem %s5, %s478
      $region52: #{entity_classifier_pallas.1} parent=47 // pred_fallthru
        _
    $region48: #{entity_classifier_pallas.1} parent=5 // pred_fallthru
      _
  $region6: #{entity_classifier_pallas.1} parent=0 // loop_footer
    %s15 = sadd.s32 1, %s11
  $region7: #{entity_classifier_pallas.1} parent=0 // loop_footer_branch
    %10 = sbr.rel target = $region3
  $region8: #{entity_classifier_pallas.1} parent=0 // loop_exit
    _

</llo_original>
